<compile_context>
chip_gen: v6e
topology: v6e:2x2x1
jax: 0.10.0
libtpu: 0.0.40
codegen_flags: <defaults>
</compile_context>

<pallas_src>
import math

import jax
import jax.numpy as jnp
from jax.experimental import pallas as pl
from jax.experimental.pallas import tpu as pltpu


def _make_boundary_kernel(H, W, GC):
    """Kernel factory; H, W (image dims) and GC (packed sublanes) are static."""

    def kernel(x_ref, mask_ref, w1_ref, b1_ref, w2_ref, b2_ref, out_ref,
               patch_ref):
        # x_ref     : (GC, L)  packed slab, L = images_per_block * H * W
        # mask_ref  : (8, L)   0/1 validity of the 8 off-center taps (periodic)
        # w*_ref    : (GC, 9*GC) block-diagonal tap-stacked weights
        # b*_ref    : (GC, 1)  packed biases
        # out_ref   : (GC, L)
        # patch_ref : (9*GC, L) VMEM scratch holding the im2col patch matrix
        L = x_ref.shape[1]
        x = x_ref[...]

        # Hoist the eight off-center tap masks once (precomputed host-side,
        # so there is no in-kernel div/mod and no repeated AND work per conv).
        masks = [mask_ref[pl.ds(r, 1), :] for r in range(8)]

        def fill_patch(src):
            # Write the nine taps of `src` into the aligned (9*GC, L) scratch.
            # Each off-center tap is a lane roll (XLU) times its 0/1 edge mask
            # (VPU); the center tap is a plain aligned copy.  Wraparound of the
            # roll across rows/images/block edges only lands on masked lanes.
            # (If a bundle dump shows the 2-port XLU saturating on v6e/v7x, the
            #  +/-1 lane shifts can be switched to halo-slice loads instead.)
            r = 0
            for dy in (-1, 0, 1):
                for dx in (-1, 0, 1):
                    t = (dy + 1) * 3 + (dx + 1)
                    if dy == 0 and dx == 0:
                        tap = src
                    else:
                        s = dy * W + dx
                        tap = pltpu.roll(src, shift=(-s) % L, axis=1) * masks[r]
                        r += 1
                    patch_ref[pl.ds(t * GC, GC), :] = tap

        # conv1 + bias + ReLU: one MXU matmul over the aligned patch scratch.
        fill_patch(x)
        r1 = jnp.dot(w1_ref[...], patch_ref[...],
                     preferred_element_type=jnp.float32)
        r1 = jnp.maximum(r1 + b1_ref[...], 0.0)

        # conv2 + bias + residual add (scratch reused; lane-dense store).
        fill_patch(r1)
        r2 = jnp.dot(w2_ref[...], patch_ref[...],
                     preferred_element_type=jnp.float32)
        out_ref[...] = x + r2 + b2_ref[...]

    return kernel


def _pack_weights(w_oihw, G):
    """(C, C, 3, 3) -> block-diagonal (G*C, 9*G*C) tap-stacked weight matrix."""
    C = w_oihw.shape[0]
    wt = jnp.transpose(w_oihw.astype(jnp.float32).reshape(C, C, 9),
                       (2, 0, 1))                       # (9, O, I), t = ky*3+kx
    eye = jnp.eye(G, dtype=jnp.float32)
    blk = jnp.einsum("gh,toi->tgohi", eye, wt)          # (9, G, C, G, C)
    blk = blk.reshape(9, G * C, G * C)                  # per-tap block-diagonal
    return jnp.transpose(blk, (1, 0, 2)).reshape(G * C, 9 * G * C)


def _edge_masks(H, W):
    """(8, H*W) 0/1 f32 validity of the 8 off-center taps (kernel row order)."""
    hh = jnp.arange(H)
    ww = jnp.arange(W)
    rows = []
    for dy in (-1, 0, 1):
        for dx in (-1, 0, 1):
            if dy == 0 and dx == 0:
                continue
            mh = (hh + dy >= 0) & (hh + dy < H)
            mw = (ww + dx >= 0) & (ww + dx < W)
            rows.append((mh[:, None] & mw[None, :]).reshape(H * W))
    return jnp.stack(rows).astype(jnp.float32)


def _vmem_capacity_bytes():
    try:
        return int(pltpu.get_tpu_info().vmem_capacity_bytes)
    except Exception:
        return 64 << 20  # conservative fallback -> small-VMEM settings


def _pick_block_images(n_imgs, lanes_per_img, max_block_lanes, prefer_split):
    """Images per grid block.  Multi-block => block lane count must be %128==0."""
    m = 128 // math.gcd(lanes_per_img, 128)   # lane-alignment quantum (images)
    total = n_imgs * lanes_per_img
    want_split = prefer_split and n_imgs >= 2 * m and total > 8 * 128
    if total <= max_block_lanes and not want_split:
        return n_imgs                         # single block == full array dims
    nb = max(1, max_block_lanes // lanes_per_img)
    if want_split:
        nb = min(nb, max(1, n_imgs // 2))     # >= 2 parallel steps (2-TC chips)
    return max(m, (nb // m) * m)              # keep block lanes 128-aligned


def boundary_forward(x_nchw, w1_oihw, b1, w2_oihw, b2):
    """PyTorch-equivalent forward. x_nchw: (N, C, H, W) f32 -> (N, C, H, W)."""
    N, C, H, W = x_nchw.shape
    L_img = H * W

    # Sublane packing: fold G images into one 8-sublane group when C < 8.
    G = max(1, 8 // C)
    while G > 1 and N % G != 0:
        G -= 1
    GC = G * C
    Np = N // G                               # image groups along the lane axis

    # Generation-aware sizing: <=64 MiB VMEM => v7x-like (2 TCs, smaller blocks,
    # prefer >=2 parallel steps); 128 MiB (v5e/v6e, 1 TC) => biggest block.
    small_vmem = _vmem_capacity_bytes() <= (64 << 20)
    max_block_lanes = 16384 if small_vmem else 32768
    vmem_limit = (32 << 20) if small_vmem else (64 << 20)

    nb = _pick_block_images(Np, L_img, max_block_lanes, prefer_split=small_vmem)
    n_blocks = -(-Np // nb)                   # cdiv
    Np_pad = n_blocks * nb
    Lb = nb * L_img
    L_pad = Np_pad * L_img

    # Lane-dense packed slab: (G*C, Np*H*W).  Ragged tails are padded with zero
    # images (discarded after the call) instead of growing the block.
    x_slab = (x_nchw.astype(jnp.float32)
              .reshape(Np, G, C, L_img)
              .transpose(1, 2, 0, 3)
              .reshape(GC, Np * L_img))
    if L_pad > Np * L_img:
        x_slab = jnp.pad(x_slab, ((0, 0), (0, L_pad - Np * L_img)))

    w1p = _pack_weights(w1_oihw, G)
    w2p = _pack_weights(w2_oihw, G)
    b1p = jnp.tile(b1.astype(jnp.float32), G).reshape(GC, 1)
    b2p = jnp.tile(b2.astype(jnp.float32), G).reshape(GC, 1)
    mask_blk = jnp.tile(_edge_masks(H, W), (1, nb))          # (8, Lb)

    out_slab = pl.pallas_call(
        _make_boundary_kernel(H, W, GC),
        out_shape=jax.ShapeDtypeStruct((GC, L_pad), jnp.float32),
        grid_spec=pltpu.PrefetchScalarGridSpec(
            num_scalar_prefetch=0,
            grid=(n_blocks,),
            in_specs=[
                pl.BlockSpec((GC, Lb), lambda i: (0, i)),       # packed x slab
                pl.BlockSpec((8, Lb), lambda i: (0, 0)),        # edge masks
                pl.BlockSpec((GC, 9 * GC), lambda i: (0, 0)),   # w1 block-diag
                pl.BlockSpec((GC, 1), lambda i: (0, 0)),        # b1
                pl.BlockSpec((GC, 9 * GC), lambda i: (0, 0)),   # w2 block-diag
                pl.BlockSpec((GC, 1), lambda i: (0, 0)),        # b2
            ],
            out_specs=pl.BlockSpec((GC, Lb), lambda i: (0, i)),  # lane-dense
            scratch_shapes=[pltpu.VMEM((9 * GC, Lb), jnp.float32)],
        ),
        compiler_params=pltpu.CompilerParams(
            dimension_semantics=("parallel",),
            vmem_limit_bytes=vmem_limit,
        ),
    )(x_slab, mask_blk, w1p, b1p, w2p, b2p)

    # (GC, Np*H*W) -> (N, C, H, W); drop the zero-image padding.
    out = (out_slab[:, : Np * L_img]
           .reshape(G, C, Np, H, W)
           .transpose(2, 0, 1, 3, 4)
           .reshape(N, C, H, W))
    return out


def _reference(x_nchw, w1_oihw, b1, w2_oihw, b2):
    dn = ("NCHW", "OIHW", "NCHW")
    r = jax.lax.conv_general_dilated(x_nchw, w1_oihw, (1, 1), "SAME",
                                     dimension_numbers=dn)
    r = jnp.maximum(r + b1.reshape(1, -1, 1, 1), 0.0)
    r = jax.lax.conv_general_dilated(r, w2_oihw, (1, 1), "SAME",
                                     dimension_numbers=dn)
    r = r + b2.reshape(1, -1, 1, 1)
    return x_nchw + r


if __name__ == "__main__":
    key = jax.random.PRNGKey(0)
    N, C, H, W = 2, 4, 16, 16  # dim = 4
    kx_, k1, kb1, k2, kb2 = jax.random.split(key, 5)

    x = jax.random.normal(kx_, (N, C, H, W), jnp.float32)

    # Deterministic PyTorch-style (kaiming-uniform-ish) init.
    fan_in = C * 3 * 3
    bound = 1.0 / float(fan_in) ** 0.5
    w1 = jax.random.uniform(k1, (C, C, 3, 3), jnp.float32, -bound, bound)
    b1 = jax.random.uniform(kb1, (C,), jnp.float32, -bound, bound)
    w2 = jax.random.uniform(k2, (C, C, 3, 3), jnp.float32, -bound, bound)
    b2 = jax.random.uniform(kb2, (C,), jnp.float32, -bound, bound)

    out = boundary_forward(x, w1, b1, w2, b2)
    jax.block_until_ready(out)

    ref = _reference(x, w1, b1, w2, b2)
    assert out.shape == (N, C, H, W)
    max_err = float(jnp.max(jnp.abs(out - ref)))
    assert jnp.allclose(out, ref, atol=1e-4, rtol=1e-4), max_err
    print("KERNEL_OK")
</pallas_src>

<mosaic_0001>
module attributes {stable_mosaic.version = 11 : i64} {
  func.func @kernel(%arg0: i32, %arg1: memref<8x256xf32, #tpu.memory_space<vmem>>, %arg2: memref<8x256xf32, #tpu.memory_space<vmem>>, %arg3: memref<8x72xf32, #tpu.memory_space<vmem>>, %arg4: memref<8x1xf32, #tpu.memory_space<vmem>>, %arg5: memref<8x72xf32, #tpu.memory_space<vmem>>, %arg6: memref<8x1xf32, #tpu.memory_space<vmem>>, %arg7: memref<8x256xf32, #tpu.memory_space<vmem>>, %arg8: memref<72x256xf32, #tpu.memory_space<vmem>>) attributes {dimension_semantics = [#tpu.dimension_semantics<parallel>], iteration_bounds = array<i64: 1>, scalar_prefetch = 0 : i64, scratch_operands = 1 : i64, tpu.core_type = #tpu.core_type<tc>, window_params = [{transform_indices = @transform_0, window_bounds = array<i64: 8, 256>}, {pipeline_mode = #tpu.pipeline_mode<synchronous>, transform_indices = @transform_1, window_bounds = array<i64: 8, 256>}, {pipeline_mode = #tpu.pipeline_mode<synchronous>, transform_indices = @transform_2, window_bounds = array<i64: 8, 72>}, {pipeline_mode = #tpu.pipeline_mode<synchronous>, transform_indices = @transform_3, window_bounds = array<i64: 8, 1>}, {pipeline_mode = #tpu.pipeline_mode<synchronous>, transform_indices = @transform_4, window_bounds = array<i64: 8, 72>}, {pipeline_mode = #tpu.pipeline_mode<synchronous>, transform_indices = @transform_5, window_bounds = array<i64: 8, 1>}, {transform_indices = @transform_6, window_bounds = array<i64: 8, 256>}]} {
    %c0 = arith.constant 0 : index
    %c0_0 = arith.constant 0 : index
    %0 = vector.load %arg1[%c0, %c0_0] : memref<8x256xf32, #tpu.memory_space<vmem>>, vector<8x256xf32>
    %c0_1 = arith.constant 0 : index
    %c0_2 = arith.constant 0 : index
    %1 = vector.load %arg2[%c0_1, %c0_2] : memref<8x256xf32, #tpu.memory_space<vmem>>, vector<1x256xf32>
    %c1 = arith.constant 1 : index
    %c0_3 = arith.constant 0 : index
    %2 = vector.load %arg2[%c1, %c0_3] : memref<8x256xf32, #tpu.memory_space<vmem>>, vector<1x256xf32>
    %c2 = arith.constant 2 : index
    %c0_4 = arith.constant 0 : index
    %3 = vector.load %arg2[%c2, %c0_4] : memref<8x256xf32, #tpu.memory_space<vmem>>, vector<1x256xf32>
    %c3 = arith.constant 3 : index
    %c0_5 = arith.constant 0 : index
    %4 = vector.load %arg2[%c3, %c0_5] : memref<8x256xf32, #tpu.memory_space<vmem>>, vector<1x256xf32>
    %c4 = arith.constant 4 : index
    %c0_6 = arith.constant 0 : index
    %5 = vector.load %arg2[%c4, %c0_6] : memref<8x256xf32, #tpu.memory_space<vmem>>, vector<1x256xf32>
    %c5 = arith.constant 5 : index
    %c0_7 = arith.constant 0 : index
    %6 = vector.load %arg2[%c5, %c0_7] : memref<8x256xf32, #tpu.memory_space<vmem>>, vector<1x256xf32>
    %c6 = arith.constant 6 : index
    %c0_8 = arith.constant 0 : index
    %7 = vector.load %arg2[%c6, %c0_8] : memref<8x256xf32, #tpu.memory_space<vmem>>, vector<1x256xf32>
    %c7 = arith.constant 7 : index
    %c0_9 = arith.constant 0 : index
    %8 = vector.load %arg2[%c7, %c0_9] : memref<8x256xf32, #tpu.memory_space<vmem>>, vector<1x256xf32>
    %c17_i32 = arith.constant 17 : i32
    %9 = tpu.dynamic_rotate %0 by %c17_i32 dim 1 : vector<8x256xf32>, i32 -> vector<8x256xf32>
    %10 = vector.broadcast %1 : vector<1x256xf32> to vector<8x256xf32>
    %11 = arith.mulf %9, %10 : vector<8x256xf32>
    %c0_10 = arith.constant 0 : index
    %c0_11 = arith.constant 0 : index
    %12 = vector.load %arg8[%c0_10, %c0_11] : memref<72x256xf32, #tpu.memory_space<vmem>>, vector<8x256xf32>
    tpu.vector_store %arg8[%c0_10, %c0_11], %11 {strides = array<i32>} : memref<72x256xf32, #tpu.memory_space<vmem>>, vector<8x256xf32>,
    %c16_i32 = arith.constant 16 : i32
    %13 = tpu.dynamic_rotate %0 by %c16_i32 dim 1 : vector<8x256xf32>, i32 -> vector<8x256xf32>
    %14 = vector.broadcast %2 : vector<1x256xf32> to vector<8x256xf32>
    %15 = arith.mulf %13, %14 : vector<8x256xf32>
    %c8 = arith.constant 8 : index
    %c0_12 = arith.constant 0 : index
    %16 = vector.load %arg8[%c8, %c0_12] : memref<72x256xf32, #tpu.memory_space<vmem>>, vector<8x256xf32>
    tpu.vector_store %arg8[%c8, %c0_12], %15 {strides = array<i32>} : memref<72x256xf32, #tpu.memory_space<vmem>>, vector<8x256xf32>,
    %c15_i32 = arith.constant 15 : i32
    %17 = tpu.dynamic_rotate %0 by %c15_i32 dim 1 : vector<8x256xf32>, i32 -> vector<8x256xf32>
    %18 = vector.broadcast %3 : vector<1x256xf32> to vector<8x256xf32>
    %19 = arith.mulf %17, %18 : vector<8x256xf32>
    %c16 = arith.constant 16 : index
    %c0_13 = arith.constant 0 : index
    %20 = vector.load %arg8[%c16, %c0_13] : memref<72x256xf32, #tpu.memory_space<vmem>>, vector<8x256xf32>
    tpu.vector_store %arg8[%c16, %c0_13], %19 {strides = array<i32>} : memref<72x256xf32, #tpu.memory_space<vmem>>, vector<8x256xf32>,
    %c1_i32 = arith.constant 1 : i32
    %21 = tpu.dynamic_rotate %0 by %c1_i32 dim 1 : vector<8x256xf32>, i32 -> vector<8x256xf32>
    %22 = vector.broadcast %4 : vector<1x256xf32> to vector<8x256xf32>
    %23 = arith.mulf %21, %22 : vector<8x256xf32>
    %c24 = arith.constant 24 : index
    %c0_14 = arith.constant 0 : index
    %24 = vector.load %arg8[%c24, %c0_14] : memref<72x256xf32, #tpu.memory_space<vmem>>, vector<8x256xf32>
    tpu.vector_store %arg8[%c24, %c0_14], %23 {strides = array<i32>} : memref<72x256xf32, #tpu.memory_space<vmem>>, vector<8x256xf32>,
    %c32 = arith.constant 32 : index
    %c0_15 = arith.constant 0 : index
    %25 = vector.load %arg8[%c32, %c0_15] : memref<72x256xf32, #tpu.memory_space<vmem>>, vector<8x256xf32>
    tpu.vector_store %arg8[%c32, %c0_15], %0 {strides = array<i32>} : memref<72x256xf32, #tpu.memory_space<vmem>>, vector<8x256xf32>,
    %c255_i32 = arith.constant 255 : i32
    %26 = tpu.dynamic_rotate %0 by %c255_i32 dim 1 : vector<8x256xf32>, i32 -> vector<8x256xf32>
    %27 = vector.broadcast %5 : vector<1x256xf32> to vector<8x256xf32>
    %28 = arith.mulf %26, %27 : vector<8x256xf32>
    %c40 = arith.constant 40 : index
    %c0_16 = arith.constant 0 : index
    %29 = vector.load %arg8[%c40, %c0_16] : memref<72x256xf32, #tpu.memory_space<vmem>>, vector<8x256xf32>
    tpu.vector_store %arg8[%c40, %c0_16], %28 {strides = array<i32>} : memref<72x256xf32, #tpu.memory_space<vmem>>, vector<8x256xf32>,
    %c241_i32 = arith.constant 241 : i32
    %30 = tpu.dynamic_rotate %0 by %c241_i32 dim 1 : vector<8x256xf32>, i32 -> vector<8x256xf32>
    %31 = vector.broadcast %6 : vector<1x256xf32> to vector<8x256xf32>
    %32 = arith.mulf %30, %31 : vector<8x256xf32>
    %c48 = arith.constant 48 : index
    %c0_17 = arith.constant 0 : index
    %33 = vector.load %arg8[%c48, %c0_17] : memref<72x256xf32, #tpu.memory_space<vmem>>, vector<8x256xf32>
    tpu.vector_store %arg8[%c48, %c0_17], %32 {strides = array<i32>} : memref<72x256xf32, #tpu.memory_space<vmem>>, vector<8x256xf32>,
    %c240_i32 = arith.constant 240 : i32
    %34 = tpu.dynamic_rotate %0 by %c240_i32 dim 1 : vector<8x256xf32>, i32 -> vector<8x256xf32>
    %35 = vector.broadcast %7 : vector<1x256xf32> to vector<8x256xf32>
    %36 = arith.mulf %34, %35 : vector<8x256xf32>
    %c56 = arith.constant 56 : index
    %c0_18 = arith.constant 0 : index
    %37 = vector.load %arg8[%c56, %c0_18] : memref<72x256xf32, #tpu.memory_space<vmem>>, vector<8x256xf32>
    tpu.vector_store %arg8[%c56, %c0_18], %36 {strides = array<i32>} : memref<72x256xf32, #tpu.memory_space<vmem>>, vector<8x256xf32>,
    %c239_i32 = arith.constant 239 : i32
    %38 = tpu.dynamic_rotate %0 by %c239_i32 dim 1 : vector<8x256xf32>, i32 -> vector<8x256xf32>
    %39 = vector.broadcast %8 : vector<1x256xf32> to vector<8x256xf32>
    %40 = arith.mulf %38, %39 : vector<8x256xf32>
    %c64 = arith.constant 64 : index
    %c0_19 = arith.constant 0 : index
    %41 = vector.load %arg8[%c64, %c0_19] : memref<72x256xf32, #tpu.memory_space<vmem>>, vector<8x256xf32>
    tpu.vector_store %arg8[%c64, %c0_19], %40 {strides = array<i32>} : memref<72x256xf32, #tpu.memory_space<vmem>>, vector<8x256xf32>,
    %c0_20 = arith.constant 0 : index
    %c0_21 = arith.constant 0 : index
    %42 = vector.load %arg3[%c0_20, %c0_21] : memref<8x72xf32, #tpu.memory_space<vmem>>, vector<8x72xf32>
    %c0_22 = arith.constant 0 : index
    %c0_23 = arith.constant 0 : index
    %43 = vector.load %arg8[%c0_22, %c0_23] : memref<72x256xf32, #tpu.memory_space<vmem>>, vector<72x256xf32>
    %cst = arith.constant dense<0.000000e+00> : vector<8x256xf32>
    %44 = tpu.matmul %42, %43, %cst {dimension_numbers = #tpu.dot_dimension_numbers<[1], [0], [0], [1], [0, 0, 1, 1], [], []>} : vector<8x72xf32>, vector<72x256xf32>, vector<8x256xf32> -> vector<8x256xf32>
    %c0_24 = arith.constant 0 : index
    %c0_25 = arith.constant 0 : index
    %45 = vector.load %arg4[%c0_24, %c0_25] : memref<8x1xf32, #tpu.memory_space<vmem>>, vector<8x1xf32>
    %46 = vector.broadcast %45 : vector<8x1xf32> to vector<8x256xf32>
    %47 = arith.addf %44, %46 : vector<8x256xf32>
    %cst_26 = arith.constant 0.000000e+00 : f32
    %48 = vector.broadcast %cst_26 : f32 to vector<8x256xf32>
    %49 = arith.maximumf %47, %48 : vector<8x256xf32>
    %c17_i32_27 = arith.constant 17 : i32
    %50 = tpu.dynamic_rotate %49 by %c17_i32_27 dim 1 : vector<8x256xf32>, i32 -> vector<8x256xf32>
    %51 = vector.broadcast %1 : vector<1x256xf32> to vector<8x256xf32>
    %52 = arith.mulf %50, %51 : vector<8x256xf32>
    %c0_28 = arith.constant 0 : index
    %c0_29 = arith.constant 0 : index
    %53 = vector.load %arg8[%c0_28, %c0_29] : memref<72x256xf32, #tpu.memory_space<vmem>>, vector<8x256xf32>
    tpu.vector_store %arg8[%c0_28, %c0_29], %52 {strides = array<i32>} : memref<72x256xf32, #tpu.memory_space<vmem>>, vector<8x256xf32>,
    %c16_i32_30 = arith.constant 16 : i32
    %54 = tpu.dynamic_rotate %49 by %c16_i32_30 dim 1 : vector<8x256xf32>, i32 -> vector<8x256xf32>
    %55 = vector.broadcast %2 : vector<1x256xf32> to vector<8x256xf32>
    %56 = arith.mulf %54, %55 : vector<8x256xf32>
    %c8_31 = arith.constant 8 : index
    %c0_32 = arith.constant 0 : index
    %57 = vector.load %arg8[%c8_31, %c0_32] : memref<72x256xf32, #tpu.memory_space<vmem>>, vector<8x256xf32>
    tpu.vector_store %arg8[%c8_31, %c0_32], %56 {strides = array<i32>} : memref<72x256xf32, #tpu.memory_space<vmem>>, vector<8x256xf32>,
    %c15_i32_33 = arith.constant 15 : i32
    %58 = tpu.dynamic_rotate %49 by %c15_i32_33 dim 1 : vector<8x256xf32>, i32 -> vector<8x256xf32>
    %59 = vector.broadcast %3 : vector<1x256xf32> to vector<8x256xf32>
    %60 = arith.mulf %58, %59 : vector<8x256xf32>
    %c16_34 = arith.constant 16 : index
    %c0_35 = arith.constant 0 : index
    %61 = vector.load %arg8[%c16_34, %c0_35] : memref<72x256xf32, #tpu.memory_space<vmem>>, vector<8x256xf32>
    tpu.vector_store %arg8[%c16_34, %c0_35], %60 {strides = array<i32>} : memref<72x256xf32, #tpu.memory_space<vmem>>, vector<8x256xf32>,
    %c1_i32_36 = arith.constant 1 : i32
    %62 = tpu.dynamic_rotate %49 by %c1_i32_36 dim 1 : vector<8x256xf32>, i32 -> vector<8x256xf32>
    %63 = vector.broadcast %4 : vector<1x256xf32> to vector<8x256xf32>
    %64 = arith.mulf %62, %63 : vector<8x256xf32>
    %c24_37 = arith.constant 24 : index
    %c0_38 = arith.constant 0 : index
    %65 = vector.load %arg8[%c24_37, %c0_38] : memref<72x256xf32, #tpu.memory_space<vmem>>, vector<8x256xf32>
    tpu.vector_store %arg8[%c24_37, %c0_38], %64 {strides = array<i32>} : memref<72x256xf32, #tpu.memory_space<vmem>>, vector<8x256xf32>,
    %c32_39 = arith.constant 32 : index
    %c0_40 = arith.constant 0 : index
    %66 = vector.load %arg8[%c32_39, %c0_40] : memref<72x256xf32, #tpu.memory_space<vmem>>, vector<8x256xf32>
    tpu.vector_store %arg8[%c32_39, %c0_40], %49 {strides = array<i32>} : memref<72x256xf32, #tpu.memory_space<vmem>>, vector<8x256xf32>,
    %c255_i32_41 = arith.constant 255 : i32
    %67 = tpu.dynamic_rotate %49 by %c255_i32_41 dim 1 : vector<8x256xf32>, i32 -> vector<8x256xf32>
    %68 = vector.broadcast %5 : vector<1x256xf32> to vector<8x256xf32>
    %69 = arith.mulf %67, %68 : vector<8x256xf32>
    %c40_42 = arith.constant 40 : index
    %c0_43 = arith.constant 0 : index
    %70 = vector.load %arg8[%c40_42, %c0_43] : memref<72x256xf32, #tpu.memory_space<vmem>>, vector<8x256xf32>
    tpu.vector_store %arg8[%c40_42, %c0_43], %69 {strides = array<i32>} : memref<72x256xf32, #tpu.memory_space<vmem>>, vector<8x256xf32>,
    %c241_i32_44 = arith.constant 241 : i32
    %71 = tpu.dynamic_rotate %49 by %c241_i32_44 dim 1 : vector<8x256xf32>, i32 -> vector<8x256xf32>
    %72 = vector.broadcast %6 : vector<1x256xf32> to vector<8x256xf32>
    %73 = arith.mulf %71, %72 : vector<8x256xf32>
    %c48_45 = arith.constant 48 : index
    %c0_46 = arith.constant 0 : index
    %74 = vector.load %arg8[%c48_45, %c0_46] : memref<72x256xf32, #tpu.memory_space<vmem>>, vector<8x256xf32>
    tpu.vector_store %arg8[%c48_45, %c0_46], %73 {strides = array<i32>} : memref<72x256xf32, #tpu.memory_space<vmem>>, vector<8x256xf32>,
    %c240_i32_47 = arith.constant 240 : i32
    %75 = tpu.dynamic_rotate %49 by %c240_i32_47 dim 1 : vector<8x256xf32>, i32 -> vector<8x256xf32>
    %76 = vector.broadcast %7 : vector<1x256xf32> to vector<8x256xf32>
    %77 = arith.mulf %75, %76 : vector<8x256xf32>
    %c56_48 = arith.constant 56 : index
    %c0_49 = arith.constant 0 : index
    %78 = vector.load %arg8[%c56_48, %c0_49] : memref<72x256xf32, #tpu.memory_space<vmem>>, vector<8x256xf32>
    tpu.vector_store %arg8[%c56_48, %c0_49], %77 {strides = array<i32>} : memref<72x256xf32, #tpu.memory_space<vmem>>, vector<8x256xf32>,
    %c239_i32_50 = arith.constant 239 : i32
    %79 = tpu.dynamic_rotate %49 by %c239_i32_50 dim 1 : vector<8x256xf32>, i32 -> vector<8x256xf32>
    %80 = vector.broadcast %8 : vector<1x256xf32> to vector<8x256xf32>
    %81 = arith.mulf %79, %80 : vector<8x256xf32>
    %c64_51 = arith.constant 64 : index
    %c0_52 = arith.constant 0 : index
    %82 = vector.load %arg8[%c64_51, %c0_52] : memref<72x256xf32, #tpu.memory_space<vmem>>, vector<8x256xf32>
    tpu.vector_store %arg8[%c64_51, %c0_52], %81 {strides = array<i32>} : memref<72x256xf32, #tpu.memory_space<vmem>>, vector<8x256xf32>,
    %c0_53 = arith.constant 0 : index
    %c0_54 = arith.constant 0 : index
    %83 = vector.load %arg5[%c0_53, %c0_54] : memref<8x72xf32, #tpu.memory_space<vmem>>, vector<8x72xf32>
    %c0_55 = arith.constant 0 : index
    %c0_56 = arith.constant 0 : index
    %84 = vector.load %arg8[%c0_55, %c0_56] : memref<72x256xf32, #tpu.memory_space<vmem>>, vector<72x256xf32>
    %cst_57 = arith.constant dense<0.000000e+00> : vector<8x256xf32>
    %85 = tpu.matmul %83, %84, %cst_57 {dimension_numbers = #tpu.dot_dimension_numbers<[1], [0], [0], [1], [0, 0, 1, 1], [], []>} : vector<8x72xf32>, vector<72x256xf32>, vector<8x256xf32> -> vector<8x256xf32>
    %86 = arith.addf %0, %85 : vector<8x256xf32>
    %c0_58 = arith.constant 0 : index
    %c0_59 = arith.constant 0 : index
    %87 = vector.load %arg6[%c0_58, %c0_59] : memref<8x1xf32, #tpu.memory_space<vmem>>, vector<8x1xf32>
    %88 = vector.broadcast %87 : vector<8x1xf32> to vector<8x256xf32>
    %89 = arith.addf %86, %88 : vector<8x256xf32>
    %c0_60 = arith.constant 0 : index
    %c0_61 = arith.constant 0 : index
    %90 = vector.load %arg7[%c0_60, %c0_61] : memref<8x256xf32, #tpu.memory_space<vmem>>, vector<8x256xf32>
    tpu.vector_store %arg7[%c0_60, %c0_61], %89 {strides = array<i32>} : memref<8x256xf32, #tpu.memory_space<vmem>>, vector<8x256xf32>,
    return
  }
  func.func @transform_0(%arg0: i32) -> (i32, i32) {
    %c0_i32 = arith.constant 0 : i32
    %c0_i32_0 = arith.constant 0 : i32
    return %c0_i32, %arg0 : i32, i32
  }
  func.func @transform_1(%arg0: i32) -> (i32, i32) {
    %c0_i32 = arith.constant 0 : i32
    %c0_i32_0 = arith.constant 0 : i32
    %c0_i32_1 = arith.constant 0 : i32
    return %c0_i32, %c0_i32_0 : i32, i32
  }
  func.func @transform_2(%arg0: i32) -> (i32, i32) {
    %c0_i32 = arith.constant 0 : i32
    %c0_i32_0 = arith.constant 0 : i32
    %c0_i32_1 = arith.constant 0 : i32
    return %c0_i32, %c0_i32_0 : i32, i32
  }
  func.func @transform_3(%arg0: i32) -> (i32, i32) {
    %c0_i32 = arith.constant 0 : i32
    %c0_i32_0 = arith.constant 0 : i32
    %c0_i32_1 = arith.constant 0 : i32
    return %c0_i32, %c0_i32_0 : i32, i32
  }
  func.func @transform_4(%arg0: i32) -> (i32, i32) {
    %c0_i32 = arith.constant 0 : i32
    %c0_i32_0 = arith.constant 0 : i32
    %c0_i32_1 = arith.constant 0 : i32
    return %c0_i32, %c0_i32_0 : i32, i32
  }
  func.func @transform_5(%arg0: i32) -> (i32, i32) {
    %c0_i32 = arith.constant 0 : i32
    %c0_i32_0 = arith.constant 0 : i32
    %c0_i32_1 = arith.constant 0 : i32
    return %c0_i32, %c0_i32_0 : i32, i32
  }
  func.func @transform_6(%arg0: i32) -> (i32, i32) {
    %c0_i32 = arith.constant 0 : i32
    %c0_i32_0 = arith.constant 0 : i32
    return %c0_i32, %arg0 : i32, i32
  }
}

</mosaic_0001>

<llo_original>
// kernel: tpu_custom_call.1
$region0: #{tpu_custom_call.1}
  #allocation0 [shape = 'u32[]', space=smem, size = 0x4, offset = 0x4, fixed_abs, tag = 'smem constant byte address 0x4 - core index']
  #allocation1 [shape = 'u32[144,128]{1,0:T(1,128)}', space=vmem, size = 0x12000, scoped, tag = 'internal scratch']
  #allocation2 [shape = 'f32[72,256]{1,0:T(8,128)}', space=vmem, size = 0x12000, scoped, tag = 'scratch operand']
  %s0 = inlined_call_operand.vmem [shape: f32[8,256], index: 0, kind: input, shape index: {}]
  %s1 = inlined_call_operand.hbm [shape: f32[8,256], index: 1, kind: input, shape index: {}]
  %s2 = inlined_call_operand.hbm [shape: f32[8,72], index: 2, kind: input, shape index: {}]
  %s3 = inlined_call_operand.vmem [shape: f32[8,1], index: 3, kind: input, shape index: {}]
  %s4 = inlined_call_operand.vmem [shape: f32[8,72], index: 4, kind: input, shape index: {}]
  %s5 = inlined_call_operand.vmem [shape: f32[8,1], index: 5, kind: input, shape index: {}]
  %s6 = inlined_call_operand.hbm [shape: f32[8,256], index: 6, kind: output, shape index: {}]
  %s7 = sld [smem:[#allocation0]]
  $region42: #{tpu_custom_call.1} parent=0
    _
  %s9 = ssub.s32 1, %s7
  %s10 = scalar_select 0, %s9, %s7
  $region1: #{tpu_custom_call.1} parent=0
    #allocation3 [shape = 'u8[8192]{0}', space=vmem, size = 0x2000, scoped, tag = 'input window, operand 1, single buffered']
    #allocation4 [shape = 's32[1]{0}', space=sflag, size = 0x4, scoped, tag = 'scoped memory for tpu_custom_call.1']
    #allocation5 [shape = 's32[1]{0}', space=sflag, size = 0x4, scoped, tag = 'scoped memory for tpu_custom_call.1']
    #allocation6 [shape = 'u8[4096]{0}', space=vmem, size = 0x1000, scoped, tag = 'input window, operand 2, single buffered']
    #allocation7 [shape = 's32[1]{0}', space=sflag, size = 0x4, scoped, tag = 'scoped memory for tpu_custom_call.1']
    #allocation8 [shape = 'u8[8192]{0}', space=vmem, size = 0x2000, scoped, tag = 'output window, operand 0, single buffered']
    %11 = vsyncpa [#allocation4], 0
    %12 = vsyncpa [#allocation7], 0
    %13 = vsyncpa [#allocation5], 0
    // Predicated region
    $region2: #{tpu_custom_call.1} parent=1 // pred_check
      _
    $region3: #{tpu_custom_call.1} parent=1 // pred_check_branch
      %15 = sbr.rel (0) target = $region5
    $region4: #{tpu_custom_call.1} parent=1 // pred_region
      _
    $region5: #{tpu_custom_call.1} parent=1 // pred_fallthru
      _
    // Predicated region
    $region6: #{tpu_custom_call.1} parent=1 // pred_check
      _
    $region7: #{tpu_custom_call.1} parent=1 // pred_check_branch
      %17 = sbr.rel (0) target = $region9
    $region8: #{tpu_custom_call.1} parent=1 // pred_region
      %s19 = ssub.s32 256, 256
      %20 = vsyncadd [#allocation4], %s19
      %s22 = sshll.u32 [#allocation3], 4
      %s23 = int_to_ptr.vmem [resolvable:$true] %s22
      %25 = dma.hbm_to_vmem [thread:$0]  %s1, 256, %s23, [#allocation4]
    $region9: #{tpu_custom_call.1} parent=1 // pred_fallthru
      _
    // Predicated region
    $region10: #{tpu_custom_call.1} parent=1 // pred_check
      _
    $region11: #{tpu_custom_call.1} parent=1 // pred_check_branch
      %27 = sbr.rel (0) target = $region13
    $region12: #{tpu_custom_call.1} parent=1 // pred_region
      %s29 = ssub.s32 128, 128
      %30 = vsyncadd [#allocation7], %s29
      %s32 = sshll.u32 [#allocation6], 4
      %s33 = int_to_ptr.vmem [resolvable:$true] %s32
      %35 = dma.hbm_to_vmem [thread:$0]  %s2, 128, %s33, [#allocation7]
    $region13: #{tpu_custom_call.1} parent=1 // pred_fallthru
      _
    // Predicated region
    $region14: #{tpu_custom_call.1} parent=1 // pred_check
      _
    $region15: #{tpu_custom_call.1} parent=1 // pred_check_branch
      %37 = sbr.rel (0) target = $region17
    $region16: #{tpu_custom_call.1} parent=1 // pred_region
      _
    $region17: #{tpu_custom_call.1} parent=1 // pred_fallthru
      _
    // Predicated region
    $region18: #{tpu_custom_call.1} parent=1 // pred_check
      _
    $region19: #{tpu_custom_call.1} parent=1 // pred_check_branch
      %39 = sbr.rel (0) target = $region21
    $region20: #{tpu_custom_call.1} parent=1 // pred_region
      _
    $region21: #{tpu_custom_call.1} parent=1 // pred_fallthru
      _
    // Predicated region
    $region22: #{tpu_custom_call.1} parent=1 // pred_check
      _
    $region23: #{tpu_custom_call.1} parent=1 // pred_check_branch
      %41 = sbr.rel (0) target = $region25
    $region24: #{tpu_custom_call.1} parent=1 // pred_region
      _
    $region25: #{tpu_custom_call.1} parent=1 // pred_fallthru
      _
    // Predicated region
    $region26: #{tpu_custom_call.1} parent=1 // pred_check
      _
    $region27: #{tpu_custom_call.1} parent=1 // pred_check_branch
      %43 = sbr.rel (0) target = $region29
    $region28: #{tpu_custom_call.1} parent=1 // pred_region
      %44 = dma.done [#allocation4], 256
    $region29: #{tpu_custom_call.1} parent=1 // pred_fallthru
      _
    // Predicated region
    $region30: #{tpu_custom_call.1} parent=1 // pred_check
      _
    $region31: #{tpu_custom_call.1} parent=1 // pred_check_branch
      %46 = sbr.rel (0) target = $region33
    $region32: #{tpu_custom_call.1} parent=1 // pred_region
      %47 = dma.done [#allocation7], 128
    $region33: #{tpu_custom_call.1} parent=1 // pred_fallthru
      _
    %v48 = vld [vmem:[%s0] sm:$0xff]
    %v49 = vld [vmem:[%s0 + $0x8] sm:$0xff]
    %v50 = vld [vmem:[#allocation3] ss:$8 sm:$0x3]
    %s51 = scalar_lea.vmem [#allocation3], 1
    %v52 = vld [vmem:[%s51] ss:$8 sm:$0x3]
    %s53 = scalar_lea.vmem [#allocation3], 2
    %v54 = vld [vmem:[%s53] ss:$8 sm:$0x3]
    %s55 = scalar_lea.vmem [#allocation3], 3
    %v56 = vld [vmem:[%s55] ss:$8 sm:$0x3]
    %s57 = scalar_lea.vmem [#allocation3], 4
    %v58 = vld [vmem:[%s57] ss:$8 sm:$0x3]
    %s59 = scalar_lea.vmem [#allocation3], 5
    %v60 = vld [vmem:[%s59] ss:$8 sm:$0x3]
    %s61 = scalar_lea.vmem [#allocation3], 6
    %v62 = vld [vmem:[%s61] ss:$8 sm:$0x3]
    %s63 = scalar_lea.vmem [#allocation3], 7
    %v64 = vld [vmem:[%s63] ss:$8 sm:$0x3]
    %65 = vrot.lane.b32.xlu0 %v48, 17
    %v66 = vpop.permute.xlu0 %65
    %67 = vrot.lane.b32.xlu0 %v49, 17
    %v68 = vpop.permute.xlu0 %67
    %v69 = vlaneseq
    %v70 = vand.u32 %v69, 127
    %vm71 = vcmp.lt.s32.totalorder %v70, 17
    %v72 = vsel %vm71, %v66, %v68
    %v73 = vsel %vm71, %v68, %v66
    %v75 = vlaneseq
    %v76 = vshrl.u32 %v75, 7
    %v77 = vsub.s32 0, %v76
    %v78 = vrot.slane %v50, %v77
    %v79 = vlaneseq
    %v80 = vshrl.u32 %v79, 7
    %v81 = vsub.s32 1, %v80
    %v82 = vrot.slane %v50, %v81
    %v85 = vmul.f32 %v73, %v78
    %v86 = vmul.f32 %v72, %v82
    %87 = vst [vmem:[#allocation2] sm:$0xff] %v85
    %88 = vst [vmem:[#allocation2 + $0x8] sm:$0xff] %v86
    %89 = vrot.lane.b32.xlu0 %v48, 16
    %v90 = vpop.permute.xlu0 %89
    %91 = vrot.lane.b32.xlu0 %v49, 16
    %v92 = vpop.permute.xlu0 %91
    %vm93 = vcmp.lt.s32.totalorder %v70, 16
    %v94 = vsel %vm93, %v90, %v92
    %v95 = vsel %vm93, %v92, %v90
    %v97 = vlaneseq
    %v98 = vshrl.u32 %v97, 7
    %v99 = vsub.s32 0, %v98
    %v100 = vrot.slane %v52, %v99
    %v101 = vlaneseq
    %v102 = vshrl.u32 %v101, 7
    %v103 = vsub.s32 1, %v102
    %v104 = vrot.slane %v52, %v103
    %v107 = vmul.f32 %v95, %v100
    %v108 = vmul.f32 %v94, %v104
    %109 = vst [vmem:[#allocation2 + $0x10] sm:$0xff] %v107
    %110 = vst [vmem:[#allocation2 + $0x18] sm:$0xff] %v108
    %111 = vrot.lane.b32.xlu0 %v48, 15
    %v112 = vpop.permute.xlu0 %111
    %113 = vrot.lane.b32.xlu0 %v49, 15
    %v114 = vpop.permute.xlu0 %113
    %vm115 = vcmp.lt.s32.totalorder %v70, 15
    %v116 = vsel %vm115, %v112, %v114
    %v117 = vsel %vm115, %v114, %v112
    %v119 = vlaneseq
    %v120 = vshrl.u32 %v119, 7
    %v121 = vsub.s32 0, %v120
    %v122 = vrot.slane %v54, %v121
    %v123 = vlaneseq
    %v124 = vshrl.u32 %v123, 7
    %v125 = vsub.s32 1, %v124
    %v126 = vrot.slane %v54, %v125
    %v129 = vmul.f32 %v117, %v122
    %v130 = vmul.f32 %v116, %v126
    %131 = vst [vmem:[#allocation2 + $0x20] sm:$0xff] %v129
    %132 = vst [vmem:[#allocation2 + $0x28] sm:$0xff] %v130
    %133 = vrot.lane.b32.xlu0 %v48, 1
    %v134 = vpop.permute.xlu0 %133
    %135 = vrot.lane.b32.xlu0 %v49, 1
    %v136 = vpop.permute.xlu0 %135
    %vm137 = vcmp.lt.s32.totalorder %v70, 1
    %v138 = vsel %vm137, %v134, %v136
    %v139 = vsel %vm137, %v136, %v134
    %v141 = vlaneseq
    %v142 = vshrl.u32 %v141, 7
    %v143 = vsub.s32 0, %v142
    %v144 = vrot.slane %v56, %v143
    %v145 = vlaneseq
    %v146 = vshrl.u32 %v145, 7
    %v147 = vsub.s32 1, %v146
    %v148 = vrot.slane %v56, %v147
    %v151 = vmul.f32 %v139, %v144
    %v152 = vmul.f32 %v138, %v148
    %153 = vst [vmem:[#allocation2 + $0x30] sm:$0xff] %v151
    %154 = vst [vmem:[#allocation2 + $0x38] sm:$0xff] %v152
    %155 = vst [vmem:[#allocation2 + $0x40] sm:$0xff] %v48
    %156 = vst [vmem:[#allocation2 + $0x48] sm:$0xff] %v49
    %157 = vrot.lane.b32.xlu0 %v48, 127
    %v158 = vpop.permute.xlu0 %157
    %159 = vrot.lane.b32.xlu0 %v49, 127
    %v160 = vpop.permute.xlu0 %159
    %vm161 = vcmp.lt.s32.totalorder %v70, 127
    %v162 = vsel %vm161, %v158, %v160
    %v163 = vsel %vm161, %v160, %v158
    %v165 = vlaneseq
    %v166 = vshrl.u32 %v165, 7
    %v167 = vsub.s32 0, %v166
    %v168 = vrot.slane %v58, %v167
    %v169 = vlaneseq
    %v170 = vshrl.u32 %v169, 7
    %v171 = vsub.s32 1, %v170
    %v172 = vrot.slane %v58, %v171
    %v175 = vmul.f32 %v162, %v168
    %v176 = vmul.f32 %v163, %v172
    %177 = vst [vmem:[#allocation2 + $0x50] sm:$0xff] %v175
    %178 = vst [vmem:[#allocation2 + $0x58] sm:$0xff] %v176
    %179 = vrot.lane.b32.xlu0 %v48, 113
    %v180 = vpop.permute.xlu0 %179
    %181 = vrot.lane.b32.xlu0 %v49, 113
    %v182 = vpop.permute.xlu0 %181
    %vm183 = vcmp.lt.s32.totalorder %v70, 113
    %v184 = vsel %vm183, %v180, %v182
    %v185 = vsel %vm183, %v182, %v180
    %v187 = vlaneseq
    %v188 = vshrl.u32 %v187, 7
    %v189 = vsub.s32 0, %v188
    %v190 = vrot.slane %v60, %v189
    %v191 = vlaneseq
    %v192 = vshrl.u32 %v191, 7
    %v193 = vsub.s32 1, %v192
    %v194 = vrot.slane %v60, %v193
    %v197 = vmul.f32 %v184, %v190
    %v198 = vmul.f32 %v185, %v194
    %199 = vst [vmem:[#allocation2 + $0x60] sm:$0xff] %v197
    %200 = vst [vmem:[#allocation2 + $0x68] sm:$0xff] %v198
    %201 = vrot.lane.b32.xlu0 %v48, 112
    %v202 = vpop.permute.xlu0 %201
    %203 = vrot.lane.b32.xlu0 %v49, 112
    %v204 = vpop.permute.xlu0 %203
    %vm205 = vcmp.lt.s32.totalorder %v70, 112
    %v206 = vsel %vm205, %v202, %v204
    %v207 = vsel %vm205, %v204, %v202
    %v209 = vlaneseq
    %v210 = vshrl.u32 %v209, 7
    %v211 = vsub.s32 0, %v210
    %v212 = vrot.slane %v62, %v211
    %v213 = vlaneseq
    %v214 = vshrl.u32 %v213, 7
    %v215 = vsub.s32 1, %v214
    %v216 = vrot.slane %v62, %v215
    %v219 = vmul.f32 %v206, %v212
    %v220 = vmul.f32 %v207, %v216
    %221 = vst [vmem:[#allocation2 + $0x70] sm:$0xff] %v219
    %222 = vst [vmem:[#allocation2 + $0x78] sm:$0xff] %v220
    %223 = vrot.lane.b32.xlu0 %v48, 111
    %v224 = vpop.permute.xlu0 %223
    %225 = vrot.lane.b32.xlu0 %v49, 111
    %v226 = vpop.permute.xlu0 %225
    %vm227 = vcmp.lt.s32.totalorder %v70, 111
    %v228 = vsel %vm227, %v224, %v226
    %v229 = vsel %vm227, %v226, %v224
    %v231 = vlaneseq
    %v232 = vshrl.u32 %v231, 7
    %v233 = vsub.s32 0, %v232
    %v234 = vrot.slane %v64, %v233
    %v235 = vlaneseq
    %v236 = vshrl.u32 %v235, 7
    %v237 = vsub.s32 1, %v236
    %v238 = vrot.slane %v64, %v237
    %v241 = vmul.f32 %v228, %v234
    %v242 = vmul.f32 %v229, %v238
    %243 = vst [vmem:[#allocation2 + $0x80] sm:$0xff] %v241
    %244 = vst [vmem:[#allocation2 + $0x88] sm:$0xff] %v242
    %v245 = vld [vmem:[#allocation6] sm:$0xff]
    %v246 = vld [vmem:[#allocation2] sm:$0xff]
    %v247 = vld [vmem:[#allocation2 + $0x8] sm:$0xff]
    %v248 = vld [vmem:[#allocation2 + $0x10] sm:$0xff]
    %v249 = vld [vmem:[#allocation2 + $0x18] sm:$0xff]
    %v250 = vld [vmem:[#allocation2 + $0x20] sm:$0xff]
    %v251 = vld [vmem:[#allocation2 + $0x28] sm:$0xff]
    %v252 = vld [vmem:[#allocation2 + $0x30] sm:$0xff]
    %v253 = vld [vmem:[#allocation2 + $0x38] sm:$0xff]
    %v254 = vld [vmem:[#allocation2 + $0x40] sm:$0xff]
    %v255 = vld [vmem:[#allocation2 + $0x48] sm:$0xff]
    %v256 = vld [vmem:[#allocation2 + $0x50] sm:$0xff]
    %v257 = vld [vmem:[#allocation2 + $0x58] sm:$0xff]
    %v258 = vld [vmem:[#allocation2 + $0x60] sm:$0xff]
    %v259 = vld [vmem:[#allocation2 + $0x68] sm:$0xff]
    %v260 = vld [vmem:[#allocation2 + $0x70] sm:$0xff]
    %v261 = vld [vmem:[#allocation2 + $0x78] sm:$0xff]
    %v262 = vld [vmem:[#allocation2 + $0x80] sm:$0xff]
    %v263 = vld [vmem:[#allocation2 + $0x88] sm:$0xff]
    %v264 = vld [vmem:[%s3] sm:$0xff]
    %266 = vset.pattern.permute.xlu0 0
    %267 = vperm.xlu0 %266, %v264
    %v268 = vpop.permute.xlu0 %267
    %vm270 = vcmask 588800
    %v272 = vsel %vm270, %v245, 0
    %274 = vmatprep.subr.mxu0 0.0
    %275 = vmatpush1.msra.mxu0 0.0
    %276 = vmatprep.subr.mxu0 0.0
    %277 = vmatpush1.msra.mxu0 0.0
    %278 = vmatprep.subr.mxu0 0.0
    %279 = vmatpush1.msra.mxu0 0.0
    %280 = vmatprep.subr.mxu0 0.0
    %281 = vmatpush1.msra.mxu0 0.0
    %282 = vmatprep.subr.mxu0 0.0
    %283 = vmatpush1.msra.mxu0 0.0
    %284 = vmatprep.subr.mxu0 0.0
    %285 = vmatpush1.msra.mxu0 0.0
    %286 = vmatprep.subr.mxu0 0.0
    %287 = vmatpush1.msra.mxu0 0.0
    %288 = vmatprep.subr.mxu0 %v263
    %289 = vmatpush1.msra.mxu0 %v262
    %290 = vmatprep.subr.mxu0 %v261
    %291 = vmatpush1.msra.mxu0 %v260
    %292 = vmatprep.subr.mxu0 %v259
    %293 = vmatpush1.msra.mxu0 %v258
    %294 = vmatprep.subr.mxu0 %v257
    %295 = vmatpush1.msra.mxu0 %v256
    %296 = vmatprep.subr.mxu0 %v255
    %297 = vmatpush1.msra.mxu0 %v254
    %298 = vmatprep.subr.mxu0 %v253
    %299 = vmatpush1.msra.mxu0 %v252
    %300 = vmatprep.subr.mxu0 %v251
    %301 = vmatpush1.msra.mxu0 %v250
    %302 = vmatprep.subr.mxu0 %v249
    %303 = vmatpush1.msra.mxu0 %v248
    %304 = vmatprep.subr.mxu0 %v247
    %305 = vmatpush1.msra.mxu0 %v246
    %306 = vmatprep.subr.mxu0 0.0
    %307 = vmatpush2.msra.mxu0 0.0
    %308 = vmatprep.subr.mxu0 0.0
    %309 = vmatpush2.msra.mxu0 0.0
    %310 = vmatprep.subr.mxu0 0.0
    %311 = vmatpush2.msra.mxu0 0.0
    %312 = vmatprep.subr.mxu0 0.0
    %313 = vmatpush2.msra.mxu0 0.0
    %314 = vmatprep.subr.mxu0 0.0
    %315 = vmatpush2.msra.mxu0 0.0
    %316 = vmatprep.subr.mxu0 0.0
    %317 = vmatpush2.msra.mxu0 0.0
    %318 = vmatprep.subr.mxu0 0.0
    %319 = vmatpush2.msra.mxu0 0.0
    %320 = vmatprep.subr.mxu0 0.0
    %321 = vmatpush2.msra.mxu0 0.0
    %322 = vmatprep.subr.mxu0 0.0
    %323 = vmatpush2.msra.mxu0 0.0
    %324 = vmatprep.subr.mxu0 0.0
    %325 = vmatpush2.msra.mxu0 0.0
    %326 = vmatprep.subr.mxu0 0.0
    %327 = vmatpush2.msra.mxu0 0.0
    %328 = vmatprep.subr.mxu0 0.0
    %329 = vmatpush2.msra.mxu0 0.0
    %330 = vmatprep.subr.mxu0 0.0
    %331 = vmatpush2.msra.mxu0 0.0
    %332 = vmatprep.subr.mxu0 0.0
    %333 = vmatpush2.msra.mxu0 0.0
    %334 = vmatprep.subr.mxu0 0.0
    %335 = vmatpush2.msra.mxu0 0.0
    %336 = vmatprep.subr.mxu0 0.0
    %337 = vmatpush2.msra.mxu0 0.0
    %338 = vmatprep.mubr.f32.mxu0 0.0
    %339 = vmatmul.mubr.f32.gmra.mxu0 %v272
    %v340 = vpop.f32.mrf.mxu0
    %v341 = vadd.f32 %v268, %v340
    %v342 = vpop.f32.mrf.mxu0
    %v343 = vadd.f32 %v268, %v342
    %344 = vdwg.mxu0
    %v345 = vmax.f32 %v341, 0.0
    %v346 = vmax.f32 %v343, 0.0
    %347 = vrot.lane.b32.xlu0 %v345, 17
    %v348 = vpop.permute.xlu0 %347
    %349 = vrot.lane.b32.xlu0 %v346, 17
    %v350 = vpop.permute.xlu0 %349
    %v351 = vsel %vm71, %v348, %v350
    %v352 = vsel %vm71, %v350, %v348
    %v353 = vmul.f32 %v352, %v78
    %v354 = vmul.f32 %v351, %v82
    %355 = vst [vmem:[#allocation2] sm:$0xff] %v353
    %356 = vst [vmem:[#allocation2 + $0x8] sm:$0xff] %v354
    %357 = vrot.lane.b32.xlu0 %v345, 16
    %v358 = vpop.permute.xlu0 %357
    %359 = vrot.lane.b32.xlu0 %v346, 16
    %v360 = vpop.permute.xlu0 %359
    %v361 = vsel %vm93, %v358, %v360
    %v362 = vsel %vm93, %v360, %v358
    %v363 = vmul.f32 %v362, %v100
    %v364 = vmul.f32 %v361, %v104
    %365 = vst [vmem:[#allocation2 + $0x10] sm:$0xff] %v363
    %366 = vst [vmem:[#allocation2 + $0x18] sm:$0xff] %v364
    %367 = vrot.lane.b32.xlu0 %v345, 15
    %v368 = vpop.permute.xlu0 %367
    %369 = vrot.lane.b32.xlu0 %v346, 15
    %v370 = vpop.permute.xlu0 %369
    %v371 = vsel %vm115, %v368, %v370
    %v372 = vsel %vm115, %v370, %v368
    %v373 = vmul.f32 %v372, %v122
    %v374 = vmul.f32 %v371, %v126
    %375 = vst [vmem:[#allocation2 + $0x20] sm:$0xff] %v373
    %376 = vst [vmem:[#allocation2 + $0x28] sm:$0xff] %v374
    %377 = vrot.lane.b32.xlu0 %v345, 1
    %v378 = vpop.permute.xlu0 %377
    %379 = vrot.lane.b32.xlu0 %v346, 1
    %v380 = vpop.permute.xlu0 %379
    %v381 = vsel %vm137, %v378, %v380
    %v382 = vsel %vm137, %v380, %v378
    %v383 = vmul.f32 %v382, %v144
    %v384 = vmul.f32 %v381, %v148
    %385 = vst [vmem:[#allocation2 + $0x30] sm:$0xff] %v383
    %386 = vst [vmem:[#allocation2 + $0x38] sm:$0xff] %v384
    %387 = vst [vmem:[#allocation2 + $0x40] sm:$0xff] %v345
    %388 = vst [vmem:[#allocation2 + $0x48] sm:$0xff] %v346
    %389 = vrot.lane.b32.xlu0 %v345, 127
    %v390 = vpop.permute.xlu0 %389
    %391 = vrot.lane.b32.xlu0 %v346, 127
    %v392 = vpop.permute.xlu0 %391
    %v393 = vsel %vm161, %v390, %v392
    %v394 = vsel %vm161, %v392, %v390
    %v395 = vmul.f32 %v393, %v168
    %v396 = vmul.f32 %v394, %v172
    %397 = vst [vmem:[#allocation2 + $0x50] sm:$0xff] %v395
    %398 = vst [vmem:[#allocation2 + $0x58] sm:$0xff] %v396
    %399 = vrot.lane.b32.xlu0 %v345, 113
    %v400 = vpop.permute.xlu0 %399
    %401 = vrot.lane.b32.xlu0 %v346, 113
    %v402 = vpop.permute.xlu0 %401
    %v403 = vsel %vm183, %v400, %v402
    %v404 = vsel %vm183, %v402, %v400
    %v405 = vmul.f32 %v403, %v190
    %v406 = vmul.f32 %v404, %v194
    %407 = vst [vmem:[#allocation2 + $0x60] sm:$0xff] %v405
    %408 = vst [vmem:[#allocation2 + $0x68] sm:$0xff] %v406
    %409 = vrot.lane.b32.xlu0 %v345, 112
    %v410 = vpop.permute.xlu0 %409
    %411 = vrot.lane.b32.xlu0 %v346, 112
    %v412 = vpop.permute.xlu0 %411
    %v413 = vsel %vm205, %v410, %v412
    %v414 = vsel %vm205, %v412, %v410
    %v415 = vmul.f32 %v413, %v212
    %v416 = vmul.f32 %v414, %v216
    %417 = vst [vmem:[#allocation2 + $0x70] sm:$0xff] %v415
    %418 = vst [vmem:[#allocation2 + $0x78] sm:$0xff] %v416
    %419 = vrot.lane.b32.xlu0 %v345, 111
    %v420 = vpop.permute.xlu0 %419
    %421 = vrot.lane.b32.xlu0 %v346, 111
    %v422 = vpop.permute.xlu0 %421
    %v423 = vsel %vm227, %v420, %v422
    %v424 = vsel %vm227, %v422, %v420
    %v425 = vmul.f32 %v423, %v234
    %v426 = vmul.f32 %v424, %v238
    %427 = vst [vmem:[#allocation2 + $0x80] sm:$0xff] %v425
    %428 = vst [vmem:[#allocation2 + $0x88] sm:$0xff] %v426
    %v429 = vld [vmem:[%s4] sm:$0xff]
    %v430 = vld [vmem:[#allocation2] sm:$0xff]
    %v431 = vld [vmem:[#allocation2 + $0x8] sm:$0xff]
    %v432 = vld [vmem:[#allocation2 + $0x10] sm:$0xff]
    %v433 = vld [vmem:[#allocation2 + $0x18] sm:$0xff]
    %v434 = vld [vmem:[#allocation2 + $0x20] sm:$0xff]
    %v435 = vld [vmem:[#allocation2 + $0x28] sm:$0xff]
    %v436 = vld [vmem:[#allocation2 + $0x30] sm:$0xff]
    %v437 = vld [vmem:[#allocation2 + $0x38] sm:$0xff]
    %v438 = vld [vmem:[#allocation2 + $0x40] sm:$0xff]
    %v439 = vld [vmem:[#allocation2 + $0x48] sm:$0xff]
    %v440 = vld [vmem:[#allocation2 + $0x50] sm:$0xff]
    %v441 = vld [vmem:[#allocation2 + $0x58] sm:$0xff]
    %v442 = vld [vmem:[#allocation2 + $0x60] sm:$0xff]
    %v443 = vld [vmem:[#allocation2 + $0x68] sm:$0xff]
    %v444 = vld [vmem:[#allocation2 + $0x70] sm:$0xff]
    %v445 = vld [vmem:[#allocation2 + $0x78] sm:$0xff]
    %v446 = vld [vmem:[#allocation2 + $0x80] sm:$0xff]
    %v447 = vld [vmem:[#allocation2 + $0x88] sm:$0xff]
    %v449 = vsel %vm270, %v429, 0
    %451 = vmatprep.subr.mxu0 0.0
    %452 = vmatpush1.msra.mxu0 0.0
    %453 = vmatprep.subr.mxu0 0.0
    %454 = vmatpush1.msra.mxu0 0.0
    %455 = vmatprep.subr.mxu0 0.0
    %456 = vmatpush1.msra.mxu0 0.0
    %457 = vmatprep.subr.mxu0 0.0
    %458 = vmatpush1.msra.mxu0 0.0
    %459 = vmatprep.subr.mxu0 0.0
    %460 = vmatpush1.msra.mxu0 0.0
    %461 = vmatprep.subr.mxu0 0.0
    %462 = vmatpush1.msra.mxu0 0.0
    %463 = vmatprep.subr.mxu0 0.0
    %464 = vmatpush1.msra.mxu0 0.0
    %465 = vmatprep.subr.mxu0 %v447
    %466 = vmatpush1.msra.mxu0 %v446
    %467 = vmatprep.subr.mxu0 %v445
    %468 = vmatpush1.msra.mxu0 %v444
    %469 = vmatprep.subr.mxu0 %v443
    %470 = vmatpush1.msra.mxu0 %v442
    %471 = vmatprep.subr.mxu0 %v441
    %472 = vmatpush1.msra.mxu0 %v440
    %473 = vmatprep.subr.mxu0 %v439
    %474 = vmatpush1.msra.mxu0 %v438
    %475 = vmatprep.subr.mxu0 %v437
    %476 = vmatpush1.msra.mxu0 %v436
    %477 = vmatprep.subr.mxu0 %v435
    %478 = vmatpush1.msra.mxu0 %v434
    %479 = vmatprep.subr.mxu0 %v433
    %480 = vmatpush1.msra.mxu0 %v432
    %481 = vmatprep.subr.mxu0 %v431
    %482 = vmatpush1.msra.mxu0 %v430
    %483 = vmatprep.subr.mxu0 0.0
    %484 = vmatpush2.msra.mxu0 0.0
    %485 = vmatprep.subr.mxu0 0.0
    %486 = vmatpush2.msra.mxu0 0.0
    %487 = vmatprep.subr.mxu0 0.0
    %488 = vmatpush2.msra.mxu0 0.0
    %489 = vmatprep.subr.mxu0 0.0
    %490 = vmatpush2.msra.mxu0 0.0
    %491 = vmatprep.subr.mxu0 0.0
    %492 = vmatpush2.msra.mxu0 0.0
    %493 = vmatprep.subr.mxu0 0.0
    %494 = vmatpush2.msra.mxu0 0.0
    %495 = vmatprep.subr.mxu0 0.0
    %496 = vmatpush2.msra.mxu0 0.0
    %497 = vmatprep.subr.mxu0 0.0
    %498 = vmatpush2.msra.mxu0 0.0
    %499 = vmatprep.subr.mxu0 0.0
    %500 = vmatpush2.msra.mxu0 0.0
    %501 = vmatprep.subr.mxu0 0.0
    %502 = vmatpush2.msra.mxu0 0.0
    %503 = vmatprep.subr.mxu0 0.0
    %504 = vmatpush2.msra.mxu0 0.0
    %505 = vmatprep.subr.mxu0 0.0
    %506 = vmatpush2.msra.mxu0 0.0
    %507 = vmatprep.subr.mxu0 0.0
    %508 = vmatpush2.msra.mxu0 0.0
    %509 = vmatprep.subr.mxu0 0.0
    %510 = vmatpush2.msra.mxu0 0.0
    %511 = vmatprep.subr.mxu0 0.0
    %512 = vmatpush2.msra.mxu0 0.0
    %513 = vmatprep.subr.mxu0 0.0
    %514 = vmatpush2.msra.mxu0 0.0
    %515 = vmatprep.mubr.f32.mxu0 0.0
    %516 = vmatmul.mubr.f32.gmra.mxu0 %v449
    %v517 = vpop.f32.mrf.mxu0
    %v518 = vadd.f32 0.0, %v517
    %v519 = vpop.f32.mrf.mxu0
    %v520 = vadd.f32 0.0, %v519
    %521 = vdwg.mxu0
    %v522 = vadd.f32 %v48, %v518
    %v523 = vadd.f32 %v49, %v520
    %v524 = vld [vmem:[%s5] sm:$0xff]
    %526 = vset.pattern.permute.xlu0 0
    %527 = vperm.xlu0 %526, %v524
    %v528 = vpop.permute.xlu0 %527
    %v530 = vadd.f32 %v522, %v528
    %v531 = vadd.f32 %v523, %v528
    %532 = vst [vmem:[#allocation8] sm:$0xff] %v530
    %533 = vst [vmem:[#allocation8 + $0x8] sm:$0xff] %v531
    // Predicated region
    $region34: #{tpu_custom_call.1} parent=1 // pred_check
      _
    $region35: #{tpu_custom_call.1} parent=1 // pred_check_branch
      %535 = sbr.rel (0) target = $region37
    $region36: #{tpu_custom_call.1} parent=1 // pred_region
      %s537 = ssub.s32 256, 256
      %538 = vsyncadd [#allocation5], %s537
      %s540 = sshll.u32 [#allocation8], 4
      %s541 = int_to_ptr.vmem [resolvable:$true] %s540
      %543 = dma.vmem_to_hbm [thread:$0]  %s541, 256, %s6, [#allocation5]
    $region37: #{tpu_custom_call.1} parent=1 // pred_fallthru
      _
    // Predicated region
    $region38: #{tpu_custom_call.1} parent=1 // pred_check
      _
    $region39: #{tpu_custom_call.1} parent=1 // pred_check_branch
      %545 = sbr.rel (0) target = $region41
    $region40: #{tpu_custom_call.1} parent=1 // pred_region
      %546 = dma.done [#allocation5], 256
    $region41: #{tpu_custom_call.1} parent=1 // pred_fallthru
      _
    %547 = vsyncpa [#allocation4], 1
    %548 = vsyncpa [#allocation7], 1
    %549 = vsyncpa [#allocation5], 1

</llo_original>
